<compile_context>
chip_gen: v6e
topology: v6e:2x2x1
jax: 0.10.0
libtpu: 0.0.40
codegen_flags: <defaults>
</compile_context>

<pallas_src>
import functools
import math

import jax
import jax.numpy as jnp
from jax.experimental import pallas as pl
from jax.experimental.pallas import tpu as pltpu


_TARGET_TILE_BYTES = 8 * 1024 * 1024   # x-tile target (2-8 MiB is the HBM-roofline sweet spot)
_MAX_FOLD = 16                         # cap lane-fold factor -> MXU work stays trivial


def _round_up(n: int, m: int) -> int:
    return ((n + m - 1) // m) * m


def _chip_params():
    """Return (vmem_limit_bytes, tensorcores_per_chip), conservatively."""
    phys = None
    try:
        info = pltpu.get_tpu_info()
        for name in ("vmem_capacity_bytes", "vmem_bytes", "vmem_size_bytes"):
            v = getattr(info, name, None)
            if v:
                phys = int(v)
                break
    except Exception:
        phys = None
    if phys is None:
        # Unknown chip: conservative limit that fits every generation; do not
        # force a megacore grid split.
        return 48 * 1024 * 1024, 1
    # v7x: 64 MiB VMEM, 2 TensorCores/chip;  v5e/v6e: 128 MiB, 1 TensorCore.
    cores = 2 if phys <= 64 * 1024 * 1024 else 1
    limit = min(112 * 1024 * 1024, int(phys * 0.75))   # 48 MiB on v7x, 96 MiB on v5e/v6e
    return limit, cores


def _choose_tile_rows(slab_rows, slab_f, itemsize, sublane, vmem_limit, groups, cores):
    # VMEM accounting: double-buffered x + out tiles, ~4 (dense) / ~6 (folded)
    # tile-sized f32 temporaries, plus small resident constants (a, b, seg, seg_t).
    n_tmp = 4 if groups == 1 else 6
    per_row = slab_f * (2 * 2 * itemsize + n_tmp * 4)
    const_bytes = 2 * (2 * slab_f * itemsize)                 # a_2, b_2
    if groups > 1:
        const_bytes += 2 * (2 * slab_f * groups * 4)          # seg, seg_t
    budget = max(int(vmem_limit * 0.6) - const_bytes, per_row * sublane)

    tr = min(max(budget // per_row, 1),
             max(_TARGET_TILE_BYTES // max(slab_f * itemsize, 1), 1))
    tr = max((tr // sublane) * sublane, sublane)

    # v7x megacore: when the natural grid is short, force an even grid length
    # (target ~8 steps => >= 4 per TensorCore).  Skip on single-TC chips.
    if cores >= 2 and slab_rows >= 2 * sublane:
        natural = pl.cdiv(slab_rows, tr)
        if natural < 8:
            want = min(8, max(2, (slab_rows // sublane) & ~1))   # even, >= 2
            tr2 = max(_round_up(pl.cdiv(slab_rows, want), sublane), sublane)
            if pl.cdiv(slab_rows, tr2) >= 2:
                tr = min(tr, tr2)

    if tr >= slab_rows:
        tr = slab_rows   # single full-extent block (layout-legal for any size)
    return tr


def _ln_kernel_dense(x_ref, a_ref, b_ref, o_ref, *, eps: float, features: int):
    """One tile, feature dim already lane-dense (or = full last dim)."""
    f32 = jnp.float32
    x = x_ref[...].astype(f32)                     # (tr, F)
    a = a_ref[...].astype(f32)                     # (1,  F)
    b = b_ref[...].astype(f32)
    inv_f = f32(1.0 / features)
    inv_n1 = f32(1.0 / max(features - 1, 1))       # unbiased (ddof=1); guarded

    mean = jnp.sum(x, axis=-1, keepdims=True) * inv_f
    xm = x - mean                                  # two-pass stats: robust in f32
    var = jnp.maximum(jnp.sum(xm * xm, axis=-1, keepdims=True) * inv_n1, 0.0)
    inv = pl.reciprocal(jnp.sqrt(var) + f32(eps))
    o_ref[...] = (a * (xm * inv) + b).astype(o_ref.dtype)


def _ln_kernel_folded(x_ref, a_ref, b_ref, seg_ref, segt_ref, o_ref, *,
                      eps: float, features: int, groups: int):
    """One tile of shape (tr, groups*features): each lane-segment of length
    `features` is an independent normalization group (a folded original row).
    Per-group statistics / broadcasts use 0/1 segment matmuls on the idle MXU
    so loads AND stores stay lane-dense (no masked vst)."""
    del groups  # documented in shapes
    f32 = jnp.float32
    x = x_ref[...].astype(f32)                     # (tr, kf)
    a = a_ref[...].astype(f32)                     # (1,  kf)
    b = b_ref[...].astype(f32)
    seg = seg_ref[...]                             # (kf, g)  0/1 f32, resident
    seg_t = segt_ref[...]                          # (g, kf)  0/1 f32, resident
    inv_f = f32(1.0 / features)
    inv_n1 = f32(1.0 / max(features - 1, 1))

    mean = jnp.dot(x, seg, preferred_element_type=f32) * inv_f        # (tr, g)
    mean_b = jnp.dot(mean, seg_t, preferred_element_type=f32)         # (tr, kf)
    xm = x - mean_b                                                    # two-pass
    var = jnp.maximum(
        jnp.dot(xm * xm, seg, preferred_element_type=f32) * inv_n1, 0.0)
    inv = pl.reciprocal(jnp.sqrt(var) + f32(eps))                      # (tr, g)
    inv_b = jnp.dot(inv, seg_t, preferred_element_type=f32)            # (tr, kf)
    o_ref[...] = (a * (xm * inv_b) + b).astype(o_ref.dtype)


def layer_norm(x, a_2, b_2, eps: float = 1e-6, *, vmem_limit_bytes=None):
    """LayerNorm over the last axis of x (matches the reference PyTorch module).

    x:   [..., features]
    a_2: [features]  (scale)
    b_2: [features]  (bias)
    """
    orig_shape = x.shape
    features = int(orig_shape[-1])
    rows = 1
    for d in orig_shape[:-1]:
        rows *= int(d)
    rows = max(rows, 1)

    itemsize = jnp.dtype(x.dtype).itemsize
    sublane = max(8, 32 // itemsize)      # 8 for f32, 16 for bf16, 32 for int8

    vmem_auto, cores = _chip_params()
    vmem_limit = int(vmem_limit_bytes) if vmem_limit_bytes else vmem_auto

    # --- Lane-density fold: if F is not a multiple of 128, fold `groups`
    # consecutive rows into the lane axis so loads/stores are unmasked.
    # Capped so the MXU segment-sum work stays negligible; rows padded to a
    # multiple of the fold factor (zero rows, cropped after write-back).
    groups, pad_rows = 1, 0
    if features > 0 and features % 128 != 0:
        k = 128 // math.gcd(features, 128)
        if 1 < k <= _MAX_FOLD:
            groups = k
            pad_rows = (-rows) % k
    padded_rows = rows + pad_rows
    slab_rows = padded_rows // groups
    slab_f = groups * features

    x2d = x.reshape(rows, features)
    if pad_rows:
        x2d = jnp.pad(x2d, ((0, pad_rows), (0, 0)))
    x2d = x2d.reshape(slab_rows, slab_f)
    a2d = jnp.tile(jnp.reshape(a_2, (-1,)), groups).reshape(1, slab_f)
    b2d = jnp.tile(jnp.reshape(b_2, (-1,)), groups).reshape(1, slab_f)

    tr = _choose_tile_rows(slab_rows, slab_f, itemsize, sublane,
                           vmem_limit, groups, cores)
    grid = (pl.cdiv(slab_rows, tr),)

    # Cost estimate (keeps XLA's scheduler hint honest, incl. folded MXU work).
    flops = 8 * rows * features
    bytes_acc = 2 * rows * features * itemsize + 2 * slab_f * jnp.dtype(a_2.dtype).itemsize
    if groups > 1:
        flops += 8 * slab_rows * slab_f * groups
        bytes_acc += 2 * slab_f * groups * 4
    cost = pl.CostEstimate(flops=flops, transcendentals=2 * rows,
                           bytes_accessed=bytes_acc)

    x_spec = pl.BlockSpec((tr, slab_f), lambda i: (i, 0))
    vec_spec = pl.BlockSpec((1, slab_f), lambda i: (0, 0))    # resident scale/bias
    out_spec = pl.BlockSpec((tr, slab_f), lambda i: (i, 0))

    if groups == 1:
        kernel = functools.partial(_ln_kernel_dense, eps=float(eps),
                                   features=features)
        in_specs = [x_spec, vec_spec, vec_spec]
        args = (x2d, a2d, b2d)
    else:
        # 0/1 segment matrices built ONCE in the wrapper, resident in VMEM.
        lane = jnp.arange(slab_f, dtype=jnp.int32)
        gidx = jnp.arange(groups, dtype=jnp.int32)
        seg = (lane[:, None] // features == gidx[None, :]).astype(jnp.float32)  # (kf, g)
        seg_t = seg.T                                                            # (g, kf)
        kernel = functools.partial(_ln_kernel_folded, eps=float(eps),
                                   features=features, groups=groups)
        in_specs = [x_spec, vec_spec, vec_spec,
                    pl.BlockSpec((slab_f, groups), lambda i: (0, 0)),
                    pl.BlockSpec((groups, slab_f), lambda i: (0, 0))]
        args = (x2d, a2d, b2d, seg, seg_t)

    out = pl.pallas_call(
        kernel,
        out_shape=jax.ShapeDtypeStruct((slab_rows, slab_f), x.dtype),
        grid_spec=pltpu.PrefetchScalarGridSpec(
            num_scalar_prefetch=0,
            grid=grid,
            in_specs=in_specs,
            out_specs=out_spec,
        ),
        compiler_params=pltpu.CompilerParams(
            dimension_semantics=("parallel",),
            vmem_limit_bytes=vmem_limit,
        ),
        cost_estimate=cost,
    )(*args)

    out = out.reshape(padded_rows, features)
    if pad_rows:
        out = out[:rows]
    return out.reshape(orig_shape)


if __name__ == "__main__":
    batch, seq, hidden = 2, 8, 32
    eps = 1e-6

    key = jax.random.PRNGKey(0)
    x = jax.random.normal(key, (batch, seq, hidden), dtype=jnp.float32)

    # Deterministic parameter init, matching LayerNorm.__init__:
    a_2 = jnp.ones((hidden,), dtype=jnp.float32)   # scale
    b_2 = jnp.zeros((hidden,), dtype=jnp.float32)  # bias

    y = layer_norm(x, a_2, b_2, eps=eps)
    y = jax.block_until_ready(y)

    # Reference check (pure JAX, same unbiased-std + (std+eps) semantics).
    mean = jnp.mean(x, axis=-1, keepdims=True)
    std = jnp.std(x, axis=-1, keepdims=True, ddof=1)
    ref = a_2 * (x - mean) / (std + eps) + b_2
    assert jnp.allclose(y, ref, atol=1e-5, rtol=1e-5), "mismatch vs reference"

    print("KERNEL_OK")
</pallas_src>

<mosaic_0001>
module attributes {stable_mosaic.version = 11 : i64} {
  func.func @_ln_kernel_folded(%arg0: i32, %arg1: memref<4x128xf32, #tpu.memory_space<vmem>>, %arg2: memref<1x128xf32, #tpu.memory_space<vmem>>, %arg3: memref<1x128xf32, #tpu.memory_space<vmem>>, %arg4: memref<128x4xf32, #tpu.memory_space<vmem>>, %arg5: memref<4x128xf32, #tpu.memory_space<vmem>>, %arg6: memref<4x128xf32, #tpu.memory_space<vmem>>) attributes {dimension_semantics = [#tpu.dimension_semantics<parallel>], iteration_bounds = array<i64: 1>, scalar_prefetch = 0 : i64, scratch_operands = 0 : i64, tpu.core_type = #tpu.core_type<tc>, window_params = [{transform_indices = @transform_0, window_bounds = array<i64: 4, 128>}, {pipeline_mode = #tpu.pipeline_mode<synchronous>, transform_indices = @transform_1, window_bounds = array<i64: 1, 128>}, {pipeline_mode = #tpu.pipeline_mode<synchronous>, transform_indices = @transform_2, window_bounds = array<i64: 1, 128>}, {pipeline_mode = #tpu.pipeline_mode<synchronous>, transform_indices = @transform_3, window_bounds = array<i64: 128, 4>}, {pipeline_mode = #tpu.pipeline_mode<synchronous>, transform_indices = @transform_4, window_bounds = array<i64: 4, 128>}, {transform_indices = @transform_5, window_bounds = array<i64: 4, 128>}]} {
    %c0 = arith.constant 0 : index
    %c0_0 = arith.constant 0 : index
    %0 = vector.load %arg1[%c0, %c0_0] : memref<4x128xf32, #tpu.memory_space<vmem>>, vector<4x128xf32>
    %c0_1 = arith.constant 0 : index
    %c0_2 = arith.constant 0 : index
    %1 = vector.load %arg2[%c0_1, %c0_2] : memref<1x128xf32, #tpu.memory_space<vmem>>, vector<1x128xf32>
    %c0_3 = arith.constant 0 : index
    %c0_4 = arith.constant 0 : index
    %2 = vector.load %arg3[%c0_3, %c0_4] : memref<1x128xf32, #tpu.memory_space<vmem>>, vector<1x128xf32>
    %c0_5 = arith.constant 0 : index
    %c0_6 = arith.constant 0 : index
    %3 = vector.load %arg4[%c0_5, %c0_6] : memref<128x4xf32, #tpu.memory_space<vmem>>, vector<128x4xf32>
    %c0_7 = arith.constant 0 : index
    %c0_8 = arith.constant 0 : index
    %4 = vector.load %arg5[%c0_7, %c0_8] : memref<4x128xf32, #tpu.memory_space<vmem>>, vector<4x128xf32>
    %cst = arith.constant dense<0.000000e+00> : vector<4x4xf32>
    %5 = tpu.matmul %0, %3, %cst {dimension_numbers = #tpu.dot_dimension_numbers<[1], [0], [0], [1], [0, 0, 1, 1], [], []>} : vector<4x128xf32>, vector<128x4xf32>, vector<4x4xf32> -> vector<4x4xf32>
    %cst_9 = arith.constant 3.125000e-02 : f32
    %6 = vector.broadcast %cst_9 : f32 to vector<4x4xf32>
    %7 = arith.mulf %5, %6 : vector<4x4xf32>
    %cst_10 = arith.constant dense<0.000000e+00> : vector<4x128xf32>
    %8 = tpu.matmul %7, %4, %cst_10 {dimension_numbers = #tpu.dot_dimension_numbers<[1], [0], [0], [1], [0, 0, 1, 1], [], []>} : vector<4x4xf32>, vector<4x128xf32>, vector<4x128xf32> -> vector<4x128xf32>
    %9 = arith.subf %0, %8 : vector<4x128xf32>
    %10 = arith.mulf %9, %9 : vector<4x128xf32>
    %cst_11 = arith.constant dense<0.000000e+00> : vector<4x4xf32>
    %11 = tpu.matmul %10, %3, %cst_11 {dimension_numbers = #tpu.dot_dimension_numbers<[1], [0], [0], [1], [0, 0, 1, 1], [], []>} : vector<4x128xf32>, vector<128x4xf32>, vector<4x4xf32> -> vector<4x4xf32>
    %cst_12 = arith.constant 0.0322580636 : f32
    %12 = vector.broadcast %cst_12 : f32 to vector<4x4xf32>
    %13 = arith.mulf %11, %12 : vector<4x4xf32>
    %cst_13 = arith.constant 0.000000e+00 : f32
    %14 = vector.broadcast %cst_13 : f32 to vector<4x4xf32>
    %15 = arith.maximumf %13, %14 : vector<4x4xf32>
    %16 = math.sqrt %15 : vector<4x4xf32>
    %cst_14 = arith.constant 9.99999997E-7 : f32
    %17 = vector.broadcast %cst_14 : f32 to vector<4x4xf32>
    %18 = arith.addf %16, %17 : vector<4x4xf32>
    %19 = tpu.reciprocal %18 : vector<4x4xf32> -> vector<4x4xf32>
    %cst_15 = arith.constant dense<0.000000e+00> : vector<4x128xf32>
    %20 = tpu.matmul %19, %4, %cst_15 {dimension_numbers = #tpu.dot_dimension_numbers<[1], [0], [0], [1], [0, 0, 1, 1], [], []>} : vector<4x4xf32>, vector<4x128xf32>, vector<4x128xf32> -> vector<4x128xf32>
    %21 = arith.mulf %9, %20 : vector<4x128xf32>
    %22 = vector.broadcast %1 : vector<1x128xf32> to vector<4x128xf32>
    %23 = arith.mulf %22, %21 : vector<4x128xf32>
    %24 = vector.broadcast %2 : vector<1x128xf32> to vector<4x128xf32>
    %25 = arith.addf %23, %24 : vector<4x128xf32>
    %c0_16 = arith.constant 0 : index
    %c0_17 = arith.constant 0 : index
    %26 = vector.load %arg6[%c0_16, %c0_17] : memref<4x128xf32, #tpu.memory_space<vmem>>, vector<4x128xf32>
    tpu.vector_store %arg6[%c0_16, %c0_17], %25 {strides = array<i32>} : memref<4x128xf32, #tpu.memory_space<vmem>>, vector<4x128xf32>,
    return
  }
  func.func @transform_0(%arg0: i32) -> (i32, i32) {
    %c0_i32 = arith.constant 0 : i32
    %c0_i32_0 = arith.constant 0 : i32
    return %arg0, %c0_i32 : i32, i32
  }
  func.func @transform_1(%arg0: i32) -> (i32, i32) {
    %c0_i32 = arith.constant 0 : i32
    %c0_i32_0 = arith.constant 0 : i32
    %c0_i32_1 = arith.constant 0 : i32
    return %c0_i32, %c0_i32_0 : i32, i32
  }
  func.func @transform_2(%arg0: i32) -> (i32, i32) {
    %c0_i32 = arith.constant 0 : i32
    %c0_i32_0 = arith.constant 0 : i32
    %c0_i32_1 = arith.constant 0 : i32
    return %c0_i32, %c0_i32_0 : i32, i32
  }
  func.func @transform_3(%arg0: i32) -> (i32, i32) {
    %c0_i32 = arith.constant 0 : i32
    %c0_i32_0 = arith.constant 0 : i32
    %c0_i32_1 = arith.constant 0 : i32
    return %c0_i32, %c0_i32_0 : i32, i32
  }
  func.func @transform_4(%arg0: i32) -> (i32, i32) {
    %c0_i32 = arith.constant 0 : i32
    %c0_i32_0 = arith.constant 0 : i32
    %c0_i32_1 = arith.constant 0 : i32
    return %c0_i32, %c0_i32_0 : i32, i32
  }
  func.func @transform_5(%arg0: i32) -> (i32, i32) {
    %c0_i32 = arith.constant 0 : i32
    %c0_i32_0 = arith.constant 0 : i32
    return %arg0, %c0_i32 : i32, i32
  }
}

</mosaic_0001>

<llo_original>
// kernel: tpu_custom_call.1
$region0: #{tpu_custom_call.1}
  #allocation0 [shape = 'u32[]', space=smem, size = 0x4, offset = 0x4, fixed_abs, tag = 'smem constant byte address 0x4 - core index']
  #allocation1 [shape = 'u32[144,128]{1,0:T(1,128)}', space=vmem, size = 0x12000, scoped, tag = 'internal scratch']
  %s0 = inlined_call_operand.vmem [shape: f32[4,128], index: 0, kind: input, shape index: {}]
  %s1 = inlined_call_operand.vmem [shape: f32[1,128], index: 1, kind: input, shape index: {}]
  %s2 = inlined_call_operand.vmem [shape: f32[1,128], index: 2, kind: input, shape index: {}]
  %s3 = inlined_call_operand.vmem [shape: f32[128,4], index: 3, kind: input, shape index: {}]
  %s4 = inlined_call_operand.vmem [shape: f32[4,128], index: 4, kind: input, shape index: {}]
  %s5 = inlined_call_operand.hbm [shape: f32[4,128], index: 5, kind: output, shape index: {}]
  %s6 = sld [smem:[#allocation0]]
  $region30: #{tpu_custom_call.1} parent=0
    _
  %s8 = ssub.s32 1, %s6
  %s9 = scalar_select 0, %s8, %s6
  $region1: #{tpu_custom_call.1} parent=0
    #allocation2 [shape = 'u8[2048]{0}', space=vmem, size = 0x800, scoped, tag = 'output window, operand 0, single buffered']
    #allocation3 [shape = 's32[1]{0}', space=sflag, size = 0x4, scoped, tag = 'scoped memory for tpu_custom_call.1']
    %10 = vsyncpa [#allocation3], 0
    // Predicated region
    $region2: #{tpu_custom_call.1} parent=1 // pred_check
      _
    $region3: #{tpu_custom_call.1} parent=1 // pred_check_branch
      %12 = sbr.rel (0) target = $region5
    $region4: #{tpu_custom_call.1} parent=1 // pred_region
      _
    $region5: #{tpu_custom_call.1} parent=1 // pred_fallthru
      _
    // Predicated region
    $region6: #{tpu_custom_call.1} parent=1 // pred_check
      _
    $region7: #{tpu_custom_call.1} parent=1 // pred_check_branch
      %14 = sbr.rel (0) target = $region9
    $region8: #{tpu_custom_call.1} parent=1 // pred_region
      _
    $region9: #{tpu_custom_call.1} parent=1 // pred_fallthru
      _
    // Predicated region
    $region10: #{tpu_custom_call.1} parent=1 // pred_check
      _
    $region11: #{tpu_custom_call.1} parent=1 // pred_check_branch
      %16 = sbr.rel (0) target = $region13
    $region12: #{tpu_custom_call.1} parent=1 // pred_region
      _
    $region13: #{tpu_custom_call.1} parent=1 // pred_fallthru
      _
    // Predicated region
    $region14: #{tpu_custom_call.1} parent=1 // pred_check
      _
    $region15: #{tpu_custom_call.1} parent=1 // pred_check_branch
      %18 = sbr.rel (0) target = $region17
    $region16: #{tpu_custom_call.1} parent=1 // pred_region
      _
    $region17: #{tpu_custom_call.1} parent=1 // pred_fallthru
      _
    // Predicated region
    $region18: #{tpu_custom_call.1} parent=1 // pred_check
      _
    $region19: #{tpu_custom_call.1} parent=1 // pred_check_branch
      %20 = sbr.rel (0) target = $region21
    $region20: #{tpu_custom_call.1} parent=1 // pred_region
      _
    $region21: #{tpu_custom_call.1} parent=1 // pred_fallthru
      _
    %v21 = vld [vmem:[%s0] sm:$0xf]
    %v22 = vld [vmem:[%s1] sm:$0x1]
    %v23 = vld [vmem:[%s2] sm:$0x1]
    %v24 = vld [vmem:[%s3] sm:$0xff]
    %v25 = vld [vmem:[%s3 + $0x8] sm:$0xff]
    %v26 = vld [vmem:[%s3 + $0x10] sm:$0xff]
    %v27 = vld [vmem:[%s3 + $0x18] sm:$0xff]
    %v28 = vld [vmem:[%s3 + $0x20] sm:$0xff]
    %v29 = vld [vmem:[%s3 + $0x28] sm:$0xff]
    %v30 = vld [vmem:[%s3 + $0x30] sm:$0xff]
    %v31 = vld [vmem:[%s3 + $0x38] sm:$0xff]
    %v32 = vld [vmem:[%s3 + $0x40] sm:$0xff]
    %v33 = vld [vmem:[%s3 + $0x48] sm:$0xff]
    %v34 = vld [vmem:[%s3 + $0x50] sm:$0xff]
    %v35 = vld [vmem:[%s3 + $0x58] sm:$0xff]
    %v36 = vld [vmem:[%s3 + $0x60] sm:$0xff]
    %v37 = vld [vmem:[%s3 + $0x68] sm:$0xff]
    %v38 = vld [vmem:[%s3 + $0x70] sm:$0xff]
    %v39 = vld [vmem:[%s3 + $0x78] sm:$0xff]
    %v40 = vld [vmem:[%s4] sm:$0xf]
    %41 = vmatprep.subr.mxu0 0.0
    %42 = vmatpush1.msra.mxu0 %v39
    %43 = vmatprep.subr.mxu0 0.0
    %44 = vmatpush1.msra.mxu0 %v38
    %45 = vmatprep.subr.mxu0 0.0
    %46 = vmatpush1.msra.mxu0 %v37
    %47 = vmatprep.subr.mxu0 0.0
    %48 = vmatpush1.msra.mxu0 %v36
    %49 = vmatprep.subr.mxu0 0.0
    %50 = vmatpush1.msra.mxu0 %v35
    %51 = vmatprep.subr.mxu0 0.0
    %52 = vmatpush1.msra.mxu0 %v34
    %53 = vmatprep.subr.mxu0 0.0
    %54 = vmatpush1.msra.mxu0 %v33
    %55 = vmatprep.subr.mxu0 0.0
    %56 = vmatpush1.msra.mxu0 %v32
    %57 = vmatprep.subr.mxu0 0.0
    %58 = vmatpush1.msra.mxu0 %v31
    %59 = vmatprep.subr.mxu0 0.0
    %60 = vmatpush1.msra.mxu0 %v30
    %61 = vmatprep.subr.mxu0 0.0
    %62 = vmatpush1.msra.mxu0 %v29
    %63 = vmatprep.subr.mxu0 0.0
    %64 = vmatpush1.msra.mxu0 %v28
    %65 = vmatprep.subr.mxu0 0.0
    %66 = vmatpush1.msra.mxu0 %v27
    %67 = vmatprep.subr.mxu0 0.0
    %68 = vmatpush1.msra.mxu0 %v26
    %69 = vmatprep.subr.mxu0 0.0
    %70 = vmatpush1.msra.mxu0 %v25
    %71 = vmatprep.subr.mxu0 0.0
    %72 = vmatpush1.msra.mxu0 %v24
    %73 = vmatprep.subr.mxu0 0.0
    %74 = vmatpush2.msra.mxu0 0.0
    %75 = vmatprep.subr.mxu0 0.0
    %76 = vmatpush2.msra.mxu0 0.0
    %77 = vmatprep.subr.mxu0 0.0
    %78 = vmatpush2.msra.mxu0 0.0
    %79 = vmatprep.subr.mxu0 0.0
    %80 = vmatpush2.msra.mxu0 0.0
    %81 = vmatprep.subr.mxu0 0.0
    %82 = vmatpush2.msra.mxu0 0.0
    %83 = vmatprep.subr.mxu0 0.0
    %84 = vmatpush2.msra.mxu0 0.0
    %85 = vmatprep.subr.mxu0 0.0
    %86 = vmatpush2.msra.mxu0 0.0
    %87 = vmatprep.subr.mxu0 0.0
    %88 = vmatpush2.msra.mxu0 0.0
    %89 = vmatprep.subr.mxu0 0.0
    %90 = vmatpush2.msra.mxu0 0.0
    %91 = vmatprep.subr.mxu0 0.0
    %92 = vmatpush2.msra.mxu0 0.0
    %93 = vmatprep.subr.mxu0 0.0
    %94 = vmatpush2.msra.mxu0 0.0
    %95 = vmatprep.subr.mxu0 0.0
    %96 = vmatpush2.msra.mxu0 0.0
    %97 = vmatprep.subr.mxu0 0.0
    %98 = vmatpush2.msra.mxu0 0.0
    %99 = vmatprep.subr.mxu0 0.0
    %100 = vmatpush2.msra.mxu0 0.0
    %101 = vmatprep.subr.mxu0 0.0
    %102 = vmatpush2.msra.mxu0 0.0
    %103 = vmatprep.subr.mxu0 0.0
    %104 = vmatpush2.msra.mxu0 0.0
    %105 = vmatprep.mubr.f32.mxu0 0.0
    %106 = vmatmul.mubr.f32.gmra.mxu0 %v21
    %v107 = vpop.f32.mrf.mxu0
    %v108 = vadd.f32 0.0, %v107
    %v109 = vpop.f32.mrf.mxu0
    %110 = vdwg.mxu0
    %v111 = vmul.f32 %v108, 0.03125
    %vm112 = vcmask 31744
    %v114 = vsel %vm112, %v111, 0
    %vm116 = vcmask 1043456
    %v118 = vsel %vm116, %v40, 0
    %120 = vmatprep.subr.mxu0 0.0
    %121 = vmatpush1.msra.mxu0 0.0
    %122 = vmatprep.subr.mxu0 0.0
    %123 = vmatpush1.msra.mxu0 0.0
    %124 = vmatprep.subr.mxu0 0.0
    %125 = vmatpush1.msra.mxu0 0.0
    %126 = vmatprep.subr.mxu0 0.0
    %127 = vmatpush1.msra.mxu0 0.0
    %128 = vmatprep.subr.mxu0 0.0
    %129 = vmatpush1.msra.mxu0 0.0
    %130 = vmatprep.subr.mxu0 0.0
    %131 = vmatpush1.msra.mxu0 0.0
    %132 = vmatprep.subr.mxu0 0.0
    %133 = vmatpush1.msra.mxu0 0.0
    %134 = vmatprep.subr.mxu0 0.0
    %135 = vmatpush1.msra.mxu0 0.0
    %136 = vmatprep.subr.mxu0 0.0
    %137 = vmatpush1.msra.mxu0 0.0
    %138 = vmatprep.subr.mxu0 0.0
    %139 = vmatpush1.msra.mxu0 0.0
    %140 = vmatprep.subr.mxu0 0.0
    %141 = vmatpush1.msra.mxu0 0.0
    %142 = vmatprep.subr.mxu0 0.0
    %143 = vmatpush1.msra.mxu0 0.0
    %144 = vmatprep.subr.mxu0 0.0
    %145 = vmatpush1.msra.mxu0 0.0
    %146 = vmatprep.subr.mxu0 0.0
    %147 = vmatpush1.msra.mxu0 0.0
    %148 = vmatprep.subr.mxu0 0.0
    %149 = vmatpush1.msra.mxu0 0.0
    %150 = vmatprep.subr.mxu0 0.0
    %151 = vmatpush1.msra.mxu0 %v118
    %152 = vmatprep.subr.mxu0 0.0
    %153 = vmatpush2.msra.mxu0 0.0
    %154 = vmatprep.subr.mxu0 0.0
    %155 = vmatpush2.msra.mxu0 0.0
    %156 = vmatprep.subr.mxu0 0.0
    %157 = vmatpush2.msra.mxu0 0.0
    %158 = vmatprep.subr.mxu0 0.0
    %159 = vmatpush2.msra.mxu0 0.0
    %160 = vmatprep.subr.mxu0 0.0
    %161 = vmatpush2.msra.mxu0 0.0
    %162 = vmatprep.subr.mxu0 0.0
    %163 = vmatpush2.msra.mxu0 0.0
    %164 = vmatprep.subr.mxu0 0.0
    %165 = vmatpush2.msra.mxu0 0.0
    %166 = vmatprep.subr.mxu0 0.0
    %167 = vmatpush2.msra.mxu0 0.0
    %168 = vmatprep.subr.mxu0 0.0
    %169 = vmatpush2.msra.mxu0 0.0
    %170 = vmatprep.subr.mxu0 0.0
    %171 = vmatpush2.msra.mxu0 0.0
    %172 = vmatprep.subr.mxu0 0.0
    %173 = vmatpush2.msra.mxu0 0.0
    %174 = vmatprep.subr.mxu0 0.0
    %175 = vmatpush2.msra.mxu0 0.0
    %176 = vmatprep.subr.mxu0 0.0
    %177 = vmatpush2.msra.mxu0 0.0
    %178 = vmatprep.subr.mxu0 0.0
    %179 = vmatpush2.msra.mxu0 0.0
    %180 = vmatprep.subr.mxu0 0.0
    %181 = vmatpush2.msra.mxu0 0.0
    %182 = vmatprep.subr.mxu0 0.0
    %183 = vmatpush2.msra.mxu0 0.0
    %184 = vmatprep.mubr.f32.mxu0 0.0
    %185 = vmatmul.mubr.f32.gmra.mxu0 %v114
    %v186 = vpop.f32.mrf.mxu0
    %v187 = vadd.f32 0.0, %v186
    %v188 = vpop.f32.mrf.mxu0
    %189 = vdwg.mxu0
    %v190 = vsub.f32 %v21, %v187
    %v191 = vmul.f32 %v190, %v190
    %192 = vmatprep.subr.mxu0 0.0
    %193 = vmatpush1.msra.mxu0 %v39
    %194 = vmatprep.subr.mxu0 0.0
    %195 = vmatpush1.msra.mxu0 %v38
    %196 = vmatprep.subr.mxu0 0.0
    %197 = vmatpush1.msra.mxu0 %v37
    %198 = vmatprep.subr.mxu0 0.0
    %199 = vmatpush1.msra.mxu0 %v36
    %200 = vmatprep.subr.mxu0 0.0
    %201 = vmatpush1.msra.mxu0 %v35
    %202 = vmatprep.subr.mxu0 0.0
    %203 = vmatpush1.msra.mxu0 %v34
    %204 = vmatprep.subr.mxu0 0.0
    %205 = vmatpush1.msra.mxu0 %v33
    %206 = vmatprep.subr.mxu0 0.0
    %207 = vmatpush1.msra.mxu0 %v32
    %208 = vmatprep.subr.mxu0 0.0
    %209 = vmatpush1.msra.mxu0 %v31
    %210 = vmatprep.subr.mxu0 0.0
    %211 = vmatpush1.msra.mxu0 %v30
    %212 = vmatprep.subr.mxu0 0.0
    %213 = vmatpush1.msra.mxu0 %v29
    %214 = vmatprep.subr.mxu0 0.0
    %215 = vmatpush1.msra.mxu0 %v28
    %216 = vmatprep.subr.mxu0 0.0
    %217 = vmatpush1.msra.mxu0 %v27
    %218 = vmatprep.subr.mxu0 0.0
    %219 = vmatpush1.msra.mxu0 %v26
    %220 = vmatprep.subr.mxu0 0.0
    %221 = vmatpush1.msra.mxu0 %v25
    %222 = vmatprep.subr.mxu0 0.0
    %223 = vmatpush1.msra.mxu0 %v24
    %224 = vmatprep.subr.mxu0 0.0
    %225 = vmatpush2.msra.mxu0 0.0
    %226 = vmatprep.subr.mxu0 0.0
    %227 = vmatpush2.msra.mxu0 0.0
    %228 = vmatprep.subr.mxu0 0.0
    %229 = vmatpush2.msra.mxu0 0.0
    %230 = vmatprep.subr.mxu0 0.0
    %231 = vmatpush2.msra.mxu0 0.0
    %232 = vmatprep.subr.mxu0 0.0
    %233 = vmatpush2.msra.mxu0 0.0
    %234 = vmatprep.subr.mxu0 0.0
    %235 = vmatpush2.msra.mxu0 0.0
    %236 = vmatprep.subr.mxu0 0.0
    %237 = vmatpush2.msra.mxu0 0.0
    %238 = vmatprep.subr.mxu0 0.0
    %239 = vmatpush2.msra.mxu0 0.0
    %240 = vmatprep.subr.mxu0 0.0
    %241 = vmatpush2.msra.mxu0 0.0
    %242 = vmatprep.subr.mxu0 0.0
    %243 = vmatpush2.msra.mxu0 0.0
    %244 = vmatprep.subr.mxu0 0.0
    %245 = vmatpush2.msra.mxu0 0.0
    %246 = vmatprep.subr.mxu0 0.0
    %247 = vmatpush2.msra.mxu0 0.0
    %248 = vmatprep.subr.mxu0 0.0
    %249 = vmatpush2.msra.mxu0 0.0
    %250 = vmatprep.subr.mxu0 0.0
    %251 = vmatpush2.msra.mxu0 0.0
    %252 = vmatprep.subr.mxu0 0.0
    %253 = vmatpush2.msra.mxu0 0.0
    %254 = vmatprep.subr.mxu0 0.0
    %255 = vmatpush2.msra.mxu0 0.0
    %256 = vmatprep.mubr.f32.mxu0 0.0
    %257 = vmatmul.mubr.f32.gmra.mxu0 %v191
    %v258 = vpop.f32.mrf.mxu0
    %v259 = vadd.f32 0.0, %v258
    %v260 = vpop.f32.mrf.mxu0
    %261 = vdwg.mxu0
    %v262 = vmul.f32 %v259, 0.032258064
    %v263 = vmax.f32 %v262, 0.0
    %v264 = vrsqrt.pop %v263
    %v265 = vmul.f32 %v263, %v264
    %vm266 = vcmp.eq.f32.partialorder %v263, inf
    %v267 = vsel %vm266, %v263, %v265
    %vm268 = vcmp.eq.f32.partialorder %v263, 0.0
    %v269 = vand.u32 %v263, 2147483648
    %v270 = vsel %vm268, %v269, %v267
    %v271 = vadd.f32 %v270, 1e-06
    %v272 = vrcp.pop %v271
    %v274 = vsel %vm112, %v272, 0
    %276 = vmatprep.subr.mxu0 0.0
    %277 = vmatpush1.msra.mxu0 0.0
    %278 = vmatprep.subr.mxu0 0.0
    %279 = vmatpush1.msra.mxu0 0.0
    %280 = vmatprep.subr.mxu0 0.0
    %281 = vmatpush1.msra.mxu0 0.0
    %282 = vmatprep.subr.mxu0 0.0
    %283 = vmatpush1.msra.mxu0 0.0
    %284 = vmatprep.subr.mxu0 0.0
    %285 = vmatpush1.msra.mxu0 0.0
    %286 = vmatprep.subr.mxu0 0.0
    %287 = vmatpush1.msra.mxu0 0.0
    %288 = vmatprep.subr.mxu0 0.0
    %289 = vmatpush1.msra.mxu0 0.0
    %290 = vmatprep.subr.mxu0 0.0
    %291 = vmatpush1.msra.mxu0 0.0
    %292 = vmatprep.subr.mxu0 0.0
    %293 = vmatpush1.msra.mxu0 0.0
    %294 = vmatprep.subr.mxu0 0.0
    %295 = vmatpush1.msra.mxu0 0.0
    %296 = vmatprep.subr.mxu0 0.0
    %297 = vmatpush1.msra.mxu0 0.0
    %298 = vmatprep.subr.mxu0 0.0
    %299 = vmatpush1.msra.mxu0 0.0
    %300 = vmatprep.subr.mxu0 0.0
    %301 = vmatpush1.msra.mxu0 0.0
    %302 = vmatprep.subr.mxu0 0.0
    %303 = vmatpush1.msra.mxu0 0.0
    %304 = vmatprep.subr.mxu0 0.0
    %305 = vmatpush1.msra.mxu0 0.0
    %306 = vmatprep.subr.mxu0 0.0
    %307 = vmatpush1.msra.mxu0 %v118
    %308 = vmatprep.subr.mxu0 0.0
    %309 = vmatpush2.msra.mxu0 0.0
    %310 = vmatprep.subr.mxu0 0.0
    %311 = vmatpush2.msra.mxu0 0.0
    %312 = vmatprep.subr.mxu0 0.0
    %313 = vmatpush2.msra.mxu0 0.0
    %314 = vmatprep.subr.mxu0 0.0
    %315 = vmatpush2.msra.mxu0 0.0
    %316 = vmatprep.subr.mxu0 0.0
    %317 = vmatpush2.msra.mxu0 0.0
    %318 = vmatprep.subr.mxu0 0.0
    %319 = vmatpush2.msra.mxu0 0.0
    %320 = vmatprep.subr.mxu0 0.0
    %321 = vmatpush2.msra.mxu0 0.0
    %322 = vmatprep.subr.mxu0 0.0
    %323 = vmatpush2.msra.mxu0 0.0
    %324 = vmatprep.subr.mxu0 0.0
    %325 = vmatpush2.msra.mxu0 0.0
    %326 = vmatprep.subr.mxu0 0.0
    %327 = vmatpush2.msra.mxu0 0.0
    %328 = vmatprep.subr.mxu0 0.0
    %329 = vmatpush2.msra.mxu0 0.0
    %330 = vmatprep.subr.mxu0 0.0
    %331 = vmatpush2.msra.mxu0 0.0
    %332 = vmatprep.subr.mxu0 0.0
    %333 = vmatpush2.msra.mxu0 0.0
    %334 = vmatprep.subr.mxu0 0.0
    %335 = vmatpush2.msra.mxu0 0.0
    %336 = vmatprep.subr.mxu0 0.0
    %337 = vmatpush2.msra.mxu0 0.0
    %338 = vmatprep.subr.mxu0 0.0
    %339 = vmatpush2.msra.mxu0 0.0
    %340 = vmatprep.mubr.f32.mxu0 0.0
    %341 = vmatmul.mubr.f32.gmra.mxu0 %v274
    %v342 = vpop.f32.mrf.mxu0
    %v343 = vadd.f32 0.0, %v342
    %v344 = vpop.f32.mrf.mxu0
    %345 = vdwg.mxu0
    %v346 = vmul.f32 %v190, %v343
    %v348 = vlaneseq
    %v349 = vshrl.u32 %v348, 7
    %v350 = vsub.s32 0, %v349
    %v351 = vrot.slane %v22, %v350
    %v353 = vmul.f32 %v351, %v346
    %v355 = vlaneseq
    %v356 = vshrl.u32 %v355, 7
    %v357 = vsub.s32 0, %v356
    %v358 = vrot.slane %v23, %v357
    %v360 = vadd.f32 %v353, %v358
    %361 = vst [vmem:[#allocation2] sm:$0xf] %v360
    // Predicated region
    $region22: #{tpu_custom_call.1} parent=1 // pred_check
      _
    $region23: #{tpu_custom_call.1} parent=1 // pred_check_branch
      %363 = sbr.rel (0) target = $region25
    $region24: #{tpu_custom_call.1} parent=1 // pred_region
      %s365 = ssub.s32 64, 64
      %366 = vsyncadd [#allocation3], %s365
      %s368 = sshll.u32 [#allocation2], 4
      %s369 = int_to_ptr.vmem [resolvable:$true] %s368
      %371 = dma.vmem_to_hbm [thread:$0]  %s369, 64, %s5, [#allocation3]
    $region25: #{tpu_custom_call.1} parent=1 // pred_fallthru
      _
    // Predicated region
    $region26: #{tpu_custom_call.1} parent=1 // pred_check
      _
    $region27: #{tpu_custom_call.1} parent=1 // pred_check_branch
      %373 = sbr.rel (0) target = $region29
    $region28: #{tpu_custom_call.1} parent=1 // pred_region
      %374 = dma.done [#allocation3], 64
    $region29: #{tpu_custom_call.1} parent=1 // pred_fallthru
      _
    %375 = vsyncpa [#allocation3], 1

</llo_original>
